<compile_context>
chip_gen: v7x
topology: tpu7x:2x2x1
jax: 0.10.0
libtpu: 0.0.40
codegen_flags: <defaults>
</compile_context>

<pallas_src>
import math

import jax
import jax.numpy as jnp
from jax.experimental import pallas as pl
from jax.experimental.pallas import tpu as pltpu


# --------------------------------------------------------------------------- #
# Kernels
# --------------------------------------------------------------------------- #
def _aff_kernel_nchw(x_ref, r_ref, xg_ref, w1t_ref, b1t_ref, w2t_ref, o_ref):
    """Layout-native NCHW kernel.

    Blocks: x/r/o (1, C, THW)  [C on sublanes, THW (multiple of 128) on lanes]
            xg (1, C, 1) f32   [global branch + 2nd local bias, per batch]
            w1t (Ci, C), w2t (C, Ci) in activation dtype; b1t (Ci, 1) f32.
    """
    x = x_ref[0]                                    # (C, THW), activation dtype
    r = r_ref[0]
    xa = x + r

    # local attention MLP (1x1 convs + folded BN); f32 accumulation on the MXU
    h = jnp.dot(w1t_ref[...], xa, preferred_element_type=jnp.float32) + b1t_ref[...]
    h = jnp.maximum(h, 0.0).astype(x.dtype)         # bf16 operand when bf16 path
    xl = jnp.dot(w2t_ref[...], h, preferred_element_type=jnp.float32)

    # xg already contains (global branch output + second local-conv bias)
    wei = jax.nn.sigmoid(xl + xg_ref[0])            # (C, THW), f32

    xf = x.astype(jnp.float32)
    rf = r.astype(jnp.float32)
    # 2*x*wei + 2*r*(1-wei) == 2*(r + wei*(x - r))
    o_ref[0] = (2.0 * (rf + wei * (xf - rf))).astype(o_ref.dtype)


def _aff_kernel_nhwc(x_ref, r_ref, xg_ref, w1_ref, b1_ref, w2_ref, o_ref):
    """Channels-last (lane-packed) kernel.

    Blocks: x/r/o (1, THW, Cp)  [Cp = P*C = multiple of 128 lanes]
            xg (1, 1, Cp) f32; w1 (Cp, Cip), w2 (Cip, Cp) in activation dtype;
            b1 (1, Cip) f32.
    """
    x = x_ref[0]                                    # (THW, Cp)
    r = r_ref[0]
    xa = x + r

    h = jnp.dot(xa, w1_ref[...], preferred_element_type=jnp.float32) + b1_ref[...]
    h = jnp.maximum(h, 0.0).astype(x.dtype)
    xl = jnp.dot(h, w2_ref[...], preferred_element_type=jnp.float32)

    wei = jax.nn.sigmoid(xl + xg_ref[0])            # (THW, Cp), f32

    xf = x.astype(jnp.float32)
    rf = r.astype(jnp.float32)
    o_ref[0] = (2.0 * (rf + wei * (xf - rf))).astype(o_ref.dtype)


# --------------------------------------------------------------------------- #
# Tiling / packing helpers
# --------------------------------------------------------------------------- #
_VMEM_LIMIT_BYTES = 48 * 1024 * 1024        # < v7x 64 MiB physical; fine on v5e/v6e
_TARGET_BLOCK_BYTES = 2 * 1024 * 1024       # per-array block; x3 arrays x2 buffers


def _choose_tile(total, other_dim, itemsize, *, unit, target_bytes):
    """Tile size along the tiled axis: byte budget, multiple of `unit`, or full."""
    cap = max(unit, (target_bytes // (other_dim * itemsize)) // unit * unit)
    if total <= cap:
        return total            # full extent — always a legal block dim
    return cap                  # partial last block handled via pl.cdiv grid


def _maybe_split_for_cores(n_other, total, tile, *, unit):
    """v7x has 2 TensorCores sharing the grid; ensure >= 2 grid steps if possible."""
    steps = n_other * (-(-total // tile))
    if steps >= 2:
        return tile
    half = (tile // 2) // unit * unit
    return half if half >= unit else tile


def _block_diag(w, p):
    """Repeat a (cin, cout) matrix p times along the diagonal -> (p*cin, p*cout)."""
    if p == 1:
        return w
    cin, cout = w.shape
    out = jnp.zeros((p * cin, p * cout), w.dtype)
    for i in range(p):
        out = out.at[i * cin:(i + 1) * cin, i * cout:(i + 1) * cout].set(w)
    return out


def _pick_lane_pack(c, hw, max_cp=512):
    """Spatial positions folded per row so the packed channel dim hits 128 lanes."""
    if c % 128 == 0:
        return 1
    p = math.lcm(c, 128) // c
    if c * p <= max_cp and hw % p == 0:
        return p
    return 1   # fallback: masked (lane-sparse) stores; pad channels upstream if hot


def _global_branch(xa_mean_f32, params):
    """Tiny global-attention MLP, hoisted out of the hot kernel (runs in f32)."""
    g = jnp.maximum(xa_mean_f32 @ params["wg1"] + params["bg1"], 0.0)
    return g @ params["wg2"] + params["bg2"]          # (N, C)


# --------------------------------------------------------------------------- #
# NCHW entry point (PyTorch module interface; layout-native, no transposes).
# --------------------------------------------------------------------------- #
def aff_pallas(x_nchw, res_nchw, params, *, target_block_bytes=_TARGET_BLOCK_BYTES,
               alias_output_to_x=False):
    """x_nchw, res_nchw: (N, C, H, W) float32 or bfloat16. Returns same shape/dtype."""
    N, C, H, W = x_nchw.shape
    HW = H * W
    dtype = x_nchw.dtype

    x = x_nchw.reshape(N, C, HW)
    r = res_nchw.reshape(N, C, HW)

    wl1, bl1 = params["wl1"], params["bl1"]            # (C, Ci), (1, Ci)
    wl2, bl2 = params["wl2"], params["bl2"]            # (Ci, C), (1, C)
    Ci = wl1.shape[1]

    # global attention branch (tiny), hoisted out of the hot kernel, f32
    m = jnp.mean(x.astype(jnp.float32) + r.astype(jnp.float32), axis=2)   # (N, C)
    xg = _global_branch(m, params)                                        # (N, C)
    xg_b = (xg + bl2).astype(jnp.float32).reshape(N, C, 1)   # fold 2nd local bias

    # NOTE: in production, do this weight prep once at parameter-prep time.
    w1t = wl1.T.astype(dtype)                          # (Ci, C)
    b1t = bl1.reshape(Ci, 1).astype(jnp.float32)       # (Ci, 1)
    w2t = wl2.T.astype(dtype)                          # (C, Ci)

    itemsize = jnp.dtype(dtype).itemsize
    THW = _choose_tile(HW, C, itemsize, unit=128, target_bytes=target_block_bytes)
    THW = _maybe_split_for_cores(N, HW, THW, unit=128)
    S = pl.cdiv(HW, THW)

    # Grid (N, S): S innermost keeps xg / weights resident across spatial steps.
    data_spec = pl.BlockSpec((1, C, THW), lambda n, s: (n, 0, s))
    xg_spec = pl.BlockSpec((1, C, 1), lambda n, s: (n, 0, 0))
    w1_spec = pl.BlockSpec((Ci, C), lambda n, s: (0, 0))
    b1_spec = pl.BlockSpec((Ci, 1), lambda n, s: (0, 0))
    w2_spec = pl.BlockSpec((C, Ci), lambda n, s: (0, 0))

    extra = {}
    if alias_output_to_x:
        # Caller must donate x (buffer is reused for the output).
        extra["input_output_aliases"] = {0: 0}

    out = pl.pallas_call(
        _aff_kernel_nchw,
        out_shape=jax.ShapeDtypeStruct((N, C, HW), dtype),
        grid=(N, S),
        in_specs=[data_spec, data_spec, xg_spec, w1_spec, b1_spec, w2_spec],
        out_specs=data_spec,
        compiler_params=pltpu.CompilerParams(
            dimension_semantics=("parallel", "parallel"),
            vmem_limit_bytes=_VMEM_LIMIT_BYTES,
        ),
        **extra,
    )(x, r, xg_b, w1t, b1t, w2t)

    return out.reshape(N, C, H, W)


# --------------------------------------------------------------------------- #
# Channels-last entry point (for NHWC-native callers; lane-packed channels).
# --------------------------------------------------------------------------- #
def aff_pallas_nhwc(x, r, params, *, target_block_bytes=_TARGET_BLOCK_BYTES,
                    alias_output_to_x=False):
    """x, r: (N, HW, C) channels-last, spatial flattened. Returns (N, HW, C)."""
    N, HW, C = x.shape
    dtype = x.dtype
    wl1, bl1 = params["wl1"], params["bl1"]
    wl2, bl2 = params["wl2"], params["bl2"]
    Ci = wl1.shape[1]

    # global attention branch, hoisted, f32
    m = jnp.mean(x.astype(jnp.float32) + r.astype(jnp.float32), axis=1)    # (N, C)
    xg = _global_branch(m, params)                                         # (N, C)

    # lane packing: fold P spatial positions per row so last dim is 128-dense
    P = _pick_lane_pack(C, HW)
    Cp, Cip, HWp = C * P, Ci * P, HW // P

    xp = x.reshape(N, HWp, Cp)
    rp = r.reshape(N, HWp, Cp)
    # NOTE: in production, do this weight packing once at parameter-prep time.
    w1p = _block_diag(wl1, P).astype(dtype)                 # (Cp, Cip)
    b1p = jnp.tile(bl1, (1, P)).astype(jnp.float32)         # (1, Cip)
    w2p = _block_diag(wl2, P).astype(dtype)                 # (Cip, Cp)
    xg_b = jnp.tile(xg + bl2, (1, P)).astype(jnp.float32).reshape(N, 1, Cp)

    itemsize = jnp.dtype(dtype).itemsize
    # unit=16 keeps the sublane tile bf16-safe ((16,128) packing) as well as f32.
    THW = _choose_tile(HWp, Cp, itemsize, unit=16, target_bytes=target_block_bytes)
    THW = _maybe_split_for_cores(N, HWp, THW, unit=16)
    S = pl.cdiv(HWp, THW)

    data_spec = pl.BlockSpec((1, THW, Cp), lambda n, s: (n, s, 0))
    xg_spec = pl.BlockSpec((1, 1, Cp), lambda n, s: (n, 0, 0))
    w1_spec = pl.BlockSpec((Cp, Cip), lambda n, s: (0, 0))
    b1_spec = pl.BlockSpec((1, Cip), lambda n, s: (0, 0))
    w2_spec = pl.BlockSpec((Cip, Cp), lambda n, s: (0, 0))

    extra = {}
    if alias_output_to_x:
        extra["input_output_aliases"] = {0: 0}

    out = pl.pallas_call(
        _aff_kernel_nhwc,
        out_shape=jax.ShapeDtypeStruct((N, HWp, Cp), dtype),
        grid=(N, S),
        in_specs=[data_spec, data_spec, xg_spec, w1_spec, b1_spec, w2_spec],
        out_specs=data_spec,
        compiler_params=pltpu.CompilerParams(
            dimension_semantics=("parallel", "parallel"),
            vmem_limit_bytes=_VMEM_LIMIT_BYTES,
        ),
        **extra,
    )(xp, rp, xg_b, w1p, b1p, w2p)

    return out.reshape(N, HW, C)


# --------------------------------------------------------------------------- #
# Parameter construction: Conv2d(1x1, bias=True) + BatchNorm(eval) folded into
# a single (in, out) matmul weight and a (1, out) bias.
# --------------------------------------------------------------------------- #
def _fold_conv_bn(key, c_in, c_out, eps=1e-5):
    k1, k2, k3, k4, k5, k6 = jax.random.split(key, 6)
    w_conv = jax.random.normal(k1, (c_out, c_in), jnp.float32) * 0.1   # (out, in)
    b_conv = jax.random.normal(k2, (c_out,), jnp.float32) * 0.1
    gamma = 1.0 + 0.1 * jax.random.normal(k3, (c_out,), jnp.float32)
    beta = 0.1 * jax.random.normal(k4, (c_out,), jnp.float32)
    run_mean = 0.1 * jax.random.normal(k5, (c_out,), jnp.float32)
    run_var = jnp.abs(1.0 + 0.1 * jax.random.normal(k6, (c_out,), jnp.float32))
    scale = gamma / jnp.sqrt(run_var + eps)                            # (out,)
    w_folded = (w_conv * scale[:, None]).T                             # (in, out)
    b_folded = (b_conv - run_mean) * scale + beta                      # (out,)
    return w_folded, b_folded.reshape(1, c_out)


def make_params(key, channels=64, r=4):
    ci = channels // r
    keys = jax.random.split(key, 4)
    wl1, bl1 = _fold_conv_bn(keys[0], channels, ci)
    wl2, bl2 = _fold_conv_bn(keys[1], ci, channels)
    wg1, bg1 = _fold_conv_bn(keys[2], channels, ci)
    wg2, bg2 = _fold_conv_bn(keys[3], ci, channels)
    return dict(wl1=wl1, bl1=bl1, wl2=wl2, bl2=bl2,
                wg1=wg1, bg1=bg1, wg2=wg2, bg2=bg2)


# Pure-JAX reference (same folded-BN semantics) for correctness checks.
def aff_reference(x_nchw, res_nchw, p):
    N, C, H, W = x_nchw.shape
    x = jnp.transpose(x_nchw, (0, 2, 3, 1)).reshape(N, H * W, C)
    r = jnp.transpose(res_nchw, (0, 2, 3, 1)).reshape(N, H * W, C)
    xa = x + r
    xl = jnp.maximum(xa @ p["wl1"] + p["bl1"], 0.0) @ p["wl2"] + p["bl2"]
    m = jnp.mean(xa, axis=1, keepdims=True)
    xg = jnp.maximum(m @ p["wg1"] + p["bg1"], 0.0) @ p["wg2"] + p["bg2"]
    wei = jax.nn.sigmoid(xl + xg)
    out = 2.0 * x * wei + 2.0 * r * (1.0 - wei)
    return jnp.transpose(out.reshape(N, H, W, C), (0, 3, 1, 2))


if __name__ == "__main__":
    key = jax.random.PRNGKey(0)
    k_x, k_r, k_p = jax.random.split(key, 3)

    N, C, H, W = 2, 64, 8, 8          # channels=64, r=4 (module defaults)
    x = jax.random.normal(k_x, (N, C, H, W), jnp.float32)
    residual = jax.random.normal(k_r, (N, C, H, W), jnp.float32)
    params = make_params(k_p, channels=C, r=4)

    ref = aff_reference(x, residual, params)

    # 1) NCHW layout-native kernel (PyTorch interface), f32
    out = jax.block_until_ready(aff_pallas(x, residual, params))
    assert out.shape == (N, C, H, W)
    assert jnp.allclose(out, ref, atol=1e-4, rtol=1e-4), "NCHW f32 mismatch"

    # 2) channels-last lane-packed kernel, f32
    x_cl = jnp.transpose(x, (0, 2, 3, 1)).reshape(N, H * W, C)
    r_cl = jnp.transpose(residual, (0, 2, 3, 1)).reshape(N, H * W, C)
    out_cl = jax.block_until_ready(aff_pallas_nhwc(x_cl, r_cl, params))
    out_cl = jnp.transpose(out_cl.reshape(N, H, W, C), (0, 3, 1, 2))
    assert jnp.allclose(out_cl, ref, atol=1e-4, rtol=1e-4), "NHWC f32 mismatch"

    # 3) bf16 HBM path (production config): half the HBM bytes, f32 accumulation.
    x_bf = x.astype(jnp.bfloat16)
    r_bf = residual.astype(jnp.bfloat16)
    out_bf = jax.block_until_ready(aff_pallas(x_bf, r_bf, params))
    assert out_bf.dtype == jnp.bfloat16
    ref_bf = aff_reference(x_bf.astype(jnp.float32), r_bf.astype(jnp.float32), params)
    assert jnp.allclose(out_bf.astype(jnp.float32), ref_bf, atol=1e-1, rtol=5e-2), \
        "NCHW bf16 mismatch"

    print("KERNEL_OK")
</pallas_src>

<mosaic_0001>
module attributes {stable_mosaic.version = 11 : i64} {
  func.func @_aff_kernel_nchw(%arg0: i32, %arg1: i32, %arg2: memref<1x64x64xf32, #tpu.memory_space<vmem>>, %arg3: memref<1x64x64xf32, #tpu.memory_space<vmem>>, %arg4: memref<1x64x1xf32, #tpu.memory_space<vmem>>, %arg5: memref<16x64xf32, #tpu.memory_space<vmem>>, %arg6: memref<16x1xf32, #tpu.memory_space<vmem>>, %arg7: memref<64x16xf32, #tpu.memory_space<vmem>>, %arg8: memref<1x64x64xf32, #tpu.memory_space<vmem>>) attributes {dimension_semantics = [#tpu.dimension_semantics<parallel>, #tpu.dimension_semantics<parallel>], iteration_bounds = array<i64: 2, 1>, scalar_prefetch = 0 : i64, scratch_operands = 0 : i64, tpu.core_type = #tpu.core_type<tc>, window_params = [{transform_indices = @transform_0, window_bounds = array<i64: 1, 64, 64>}, {transform_indices = @transform_1, window_bounds = array<i64: 1, 64, 64>}, {transform_indices = @transform_2, window_bounds = array<i64: 1, 64, 1>}, {pipeline_mode = #tpu.pipeline_mode<synchronous>, transform_indices = @transform_3, window_bounds = array<i64: 16, 64>}, {pipeline_mode = #tpu.pipeline_mode<synchronous>, transform_indices = @transform_4, window_bounds = array<i64: 16, 1>}, {pipeline_mode = #tpu.pipeline_mode<synchronous>, transform_indices = @transform_5, window_bounds = array<i64: 64, 16>}, {transform_indices = @transform_6, window_bounds = array<i64: 1, 64, 64>}]} {
    %c0 = arith.constant 0 : index
    %c0_0 = arith.constant 0 : index
    %c0_1 = arith.constant 0 : index
    %0 = vector.load %arg2[%c0, %c0_0, %c0_1] : memref<1x64x64xf32, #tpu.memory_space<vmem>>, vector<1x64x64xf32>
    %1 = vector.shape_cast %0 : vector<1x64x64xf32> to vector<64x64xf32>
    %c0_2 = arith.constant 0 : index
    %c0_3 = arith.constant 0 : index
    %c0_4 = arith.constant 0 : index
    %2 = vector.load %arg3[%c0_2, %c0_3, %c0_4] : memref<1x64x64xf32, #tpu.memory_space<vmem>>, vector<1x64x64xf32>
    %3 = vector.shape_cast %2 : vector<1x64x64xf32> to vector<64x64xf32>
    %4 = arith.addf %1, %3 : vector<64x64xf32>
    %c0_5 = arith.constant 0 : index
    %c0_6 = arith.constant 0 : index
    %5 = vector.load %arg5[%c0_5, %c0_6] : memref<16x64xf32, #tpu.memory_space<vmem>>, vector<16x64xf32>
    %cst = arith.constant dense<0.000000e+00> : vector<16x64xf32>
    %6 = tpu.matmul %5, %4, %cst {dimension_numbers = #tpu.dot_dimension_numbers<[1], [0], [0], [1], [0, 0, 1, 1], [], []>} : vector<16x64xf32>, vector<64x64xf32>, vector<16x64xf32> -> vector<16x64xf32>
    %c0_7 = arith.constant 0 : index
    %c0_8 = arith.constant 0 : index
    %7 = vector.load %arg6[%c0_7, %c0_8] : memref<16x1xf32, #tpu.memory_space<vmem>>, vector<16x1xf32>
    %8 = vector.broadcast %7 : vector<16x1xf32> to vector<16x64xf32>
    %9 = arith.addf %6, %8 : vector<16x64xf32>
    %cst_9 = arith.constant 0.000000e+00 : f32
    %10 = vector.broadcast %cst_9 : f32 to vector<16x64xf32>
    %11 = arith.maximumf %9, %10 : vector<16x64xf32>
    %c0_10 = arith.constant 0 : index
    %c0_11 = arith.constant 0 : index
    %12 = vector.load %arg7[%c0_10, %c0_11] : memref<64x16xf32, #tpu.memory_space<vmem>>, vector<64x16xf32>
    %cst_12 = arith.constant dense<0.000000e+00> : vector<64x64xf32>
    %13 = tpu.matmul %12, %11, %cst_12 {dimension_numbers = #tpu.dot_dimension_numbers<[1], [0], [0], [1], [0, 0, 1, 1], [], []>} : vector<64x16xf32>, vector<16x64xf32>, vector<64x64xf32> -> vector<64x64xf32>
    %c0_13 = arith.constant 0 : index
    %c0_14 = arith.constant 0 : index
    %c0_15 = arith.constant 0 : index
    %14 = vector.load %arg4[%c0_13, %c0_14, %c0_15] : memref<1x64x1xf32, #tpu.memory_space<vmem>>, vector<1x64x1xf32>
    %15 = vector.shape_cast %14 : vector<1x64x1xf32> to vector<64x1xf32>
    %16 = vector.broadcast %15 : vector<64x1xf32> to vector<64x64xf32>
    %17 = arith.addf %13, %16 : vector<64x64xf32>
    %18 = arith.negf %17 : vector<64x64xf32>
    %19 = math.exp %18 : vector<64x64xf32>
    %cst_16 = arith.constant 1.000000e+00 : f32
    %20 = vector.broadcast %cst_16 : f32 to vector<64x64xf32>
    %21 = arith.addf %20, %19 : vector<64x64xf32>
    %22 = arith.divf %20, %21 : vector<64x64xf32>
    %23 = arith.subf %1, %3 : vector<64x64xf32>
    %24 = arith.mulf %22, %23 : vector<64x64xf32>
    %25 = arith.addf %3, %24 : vector<64x64xf32>
    %cst_17 = arith.constant 2.000000e+00 : f32
    %26 = vector.broadcast %cst_17 : f32 to vector<64x64xf32>
    %27 = arith.mulf %26, %25 : vector<64x64xf32>
    %c0_18 = arith.constant 0 : index
    %c0_19 = arith.constant 0 : index
    %c0_20 = arith.constant 0 : index
    %28 = vector.load %arg8[%c0_18, %c0_19, %c0_20] : memref<1x64x64xf32, #tpu.memory_space<vmem>>, vector<1x64x64xf32>
    %29 = vector.shape_cast %28 : vector<1x64x64xf32> to vector<64x64xf32>
    %30 = vector.shape_cast %27 : vector<64x64xf32> to vector<1x64x64xf32>
    tpu.vector_store %arg8[%c0_18, %c0_19, %c0_20], %30 {strides = array<i32>} : memref<1x64x64xf32, #tpu.memory_space<vmem>>, vector<1x64x64xf32>,
    return
  }
  func.func @transform_0(%arg0: i32, %arg1: i32) -> (i32, i32, i32) {
    %c0_i32 = arith.constant 0 : i32
    %c0_i32_0 = arith.constant 0 : i32
    return %arg0, %c0_i32, %arg1 : i32, i32, i32
  }
  func.func @transform_1(%arg0: i32, %arg1: i32) -> (i32, i32, i32) {
    %c0_i32 = arith.constant 0 : i32
    %c0_i32_0 = arith.constant 0 : i32
    return %arg0, %c0_i32, %arg1 : i32, i32, i32
  }
  func.func @transform_2(%arg0: i32, %arg1: i32) -> (i32, i32, i32) {
    %c0_i32 = arith.constant 0 : i32
    %c0_i32_0 = arith.constant 0 : i32
    %c0_i32_1 = arith.constant 0 : i32
    return %arg0, %c0_i32, %c0_i32_0 : i32, i32, i32
  }
  func.func @transform_3(%arg0: i32, %arg1: i32) -> (i32, i32) {
    %c0_i32 = arith.constant 0 : i32
    %c0_i32_0 = arith.constant 0 : i32
    %c0_i32_1 = arith.constant 0 : i32
    return %c0_i32, %c0_i32_0 : i32, i32
  }
  func.func @transform_4(%arg0: i32, %arg1: i32) -> (i32, i32) {
    %c0_i32 = arith.constant 0 : i32
    %c0_i32_0 = arith.constant 0 : i32
    %c0_i32_1 = arith.constant 0 : i32
    return %c0_i32, %c0_i32_0 : i32, i32
  }
  func.func @transform_5(%arg0: i32, %arg1: i32) -> (i32, i32) {
    %c0_i32 = arith.constant 0 : i32
    %c0_i32_0 = arith.constant 0 : i32
    %c0_i32_1 = arith.constant 0 : i32
    return %c0_i32, %c0_i32_0 : i32, i32
  }
  func.func @transform_6(%arg0: i32, %arg1: i32) -> (i32, i32, i32) {
    %c0_i32 = arith.constant 0 : i32
    %c0_i32_0 = arith.constant 0 : i32
    return %arg0, %c0_i32, %arg1 : i32, i32, i32
  }
}

</mosaic_0001>

<llo_original>
// kernel: tpu_custom_call.1
$region0: #{tpu_custom_call.1}
  #allocation0 [shape = 'u32[]', space=smem, size = 0x4, offset = 0x4, fixed_abs, tag = 'smem constant byte address 0x4 - core index']
  #allocation1 [shape = 'u32[144,128]{1,0:T(1,128)}', space=vmem, size = 0x12000, scoped, tag = 'internal scratch']
  %s0 = inlined_call_operand.vmem [shape: f32[2,64,64], index: 0, kind: input, shape index: {}]
  %s1 = inlined_call_operand.hbm [shape: f32[2,64,64], index: 1, kind: input, shape index: {}]
  %s2 = inlined_call_operand.vmem [shape: f32[2,64,1], index: 2, kind: input, shape index: {}]
  %s3 = inlined_call_operand.vmem [shape: f32[16,64], index: 3, kind: input, shape index: {}]
  %s4 = inlined_call_operand.vmem [shape: f32[16,1], index: 4, kind: input, shape index: {}]
  %s5 = inlined_call_operand.vmem [shape: f32[64,16], index: 5, kind: input, shape index: {}]
  %s6 = inlined_call_operand.hbm [shape: f32[2,64,64], index: 6, kind: output, shape index: {}]
  %s7 = sld [smem:[#allocation0]]
  $region61: #{tpu_custom_call.1} parent=0
    _
  %s9 = ssub.s32 1, %s7
  %s10 = scalar_select 0, %s9, %s7
  $region1: #{tpu_custom_call.1} parent=0
    #allocation2 [shape = 'u8[65536]{0}', space=vmem, size = 0x10000, scoped, tag = 'input window, operand 1']
    #allocation3 [shape = 's32[2]{0}', space=sflag, size = 0x8, scoped, tag = 'scoped memory for tpu_custom_call.1']
    #allocation4 [shape = 's32[2]{0}', space=sflag, size = 0x8, scoped, tag = 'scoped memory for tpu_custom_call.1']
    #allocation5 [shape = 'u8[65536]{0}', space=vmem, size = 0x10000, scoped, tag = 'output window, operand 0']
    %11 = vsyncpa [#allocation3], 0
    %s12 = scalar_lea.sflag [#allocation3], 1
    %13 = vsyncpa %s12, 0
    %14 = vsyncpa [#allocation4], 0
    %s15 = scalar_lea.sflag [#allocation4], 1
    %16 = vsyncpa %s15, 0
    loop: start=0, step=1, limit=4
    $region2: #{tpu_custom_call.1} parent=1 // loop_pre_header
      _
    $region3: #{tpu_custom_call.1} parent=1 // loop_header
      %s18 = sphi 0, %s22
      %p19 = scmp.ge.s32.totalorder %s18, 4
      %s25 = sphi 0, %s37
      %s26 = sphi 0, %s33
      %s27 = sphi 0, %s25
      %s28 = sphi 0, %s26
      %s29 = sphi 0, %s27
      %s30 = sphi 0, %s28
      %s42 = sphi 0, %s44
      %s45 = sphi 0, %s42
      %s46 = sphi 0, %s45
      %s62 = sphi 0, %s46
      %s70 = sphi 0, %s72
      %s73 = sphi 0, %s70
      %s74 = sphi 0, %s73
      %s90 = sphi 0, %s74
      %s96 = sphi 0, %s98
      %s99 = sphi 0, %s96
      %s100 = sphi 0, %s99
      %s116 = sphi 0, %s100
      %s120 = sphi 0, %s120
      %s122 = sphi 0, %s120
      %s123 = sphi 0, %s122
      %s137 = sphi 0, %s123
      %s141 = sphi 0, %s141
      %s143 = sphi 0, %s141
      %s144 = sphi 0, %s143
      %s158 = sphi 0, %s144
      %s162 = sphi 0, %s162
      %s164 = sphi 0, %s162
      %s165 = sphi 0, %s164
      %s179 = sphi 0, %s165
      %s187 = sphi 0, %s189
      %s190 = sphi 0, %s187
      %s191 = sphi 0, %s190
      %s207 = sphi 0, %s191
    $region4: #{tpu_custom_call.1} parent=1 // loop_header_branch
      %21 = sbr.rel (%p19) target = $region8
    $region5: #{tpu_custom_call.1} parent=1 // loop_body
      %s23 = ssub.s32 %s18, 1
      %s24 = ssub.s32 %s18, 2
      %s31 = sadd.s32 1, %s26
      %p32 = scmp.ge.s32.totalorder %s31, 1
      %s33 = scalar_select %p32, 0, %s31
      %s34 = sadd.s32 1, %s25
      %s35 = scalar_select %p32, %s34, %s25
      %p36 = scmp.ge.s32.totalorder %s35, 2
      %s37 = scalar_select %p36, 0, %s35
      %s38 = ssub.s32 %s25, %s37
      %s39 = ssub.s32 %s26, %s33
      %s40 = sor.u32 %s38, %s39
      %p41 = scmp.eq.s32.totalorder %s40, 0
      %s43 = sadd.s32 %s42, 1
      %s44 = scalar_select %p41, %s42, %s43
      %p47 = pneg %p41
      %p48 = scmp.eq.s32.totalorder %s18, 1
      %p49 = por %p47, %p48
      %p50 = scmp.ne.s32.totalorder %s42, %s45
      %p51 = scmp.eq.s32.totalorder %s18, 0
      %p52 = por %p50, %p51
      %p53 = scmp.ne.s32.totalorder %s42, %s45
      %p54 = scmp.eq.s32.totalorder %s23, 1
      %p55 = por %p53, %p54
      %p56 = scmp.ne.s32.totalorder %s45, %s46
      %p57 = scmp.eq.s32.totalorder %s23, 0
      %p58 = por %p56, %p57
      %p59 = scmp.ne.s32.totalorder %s45, %s46
      %p60 = scmp.eq.s32.totalorder %s24, 1
      %p61 = por %p59, %p60
      %p63 = scmp.ne.s32.totalorder %s46, %s62
      %p64 = scmp.eq.s32.totalorder %s24, 0
      %p65 = por %p63, %p64
      %s66 = ssub.s32 %s25, %s37
      %s67 = ssub.s32 %s26, %s33
      %s68 = sor.u32 %s66, %s67
      %p69 = scmp.eq.s32.totalorder %s68, 0
      %s71 = sadd.s32 %s70, 1
      %s72 = scalar_select %p69, %s70, %s71
      %p75 = pneg %p69
      %p76 = scmp.eq.s32.totalorder %s18, 1
      %p77 = por %p75, %p76
      %p78 = scmp.ne.s32.totalorder %s70, %s73
      %p79 = scmp.eq.s32.totalorder %s18, 0
      %p80 = por %p78, %p79
      %p81 = scmp.ne.s32.totalorder %s70, %s73
      %p82 = scmp.eq.s32.totalorder %s23, 1
      %p83 = por %p81, %p82
      %p84 = scmp.ne.s32.totalorder %s73, %s74
      %p85 = scmp.eq.s32.totalorder %s23, 0
      %p86 = por %p84, %p85
      %p87 = scmp.ne.s32.totalorder %s73, %s74
      %p88 = scmp.eq.s32.totalorder %s24, 1
      %p89 = por %p87, %p88
      %p91 = scmp.ne.s32.totalorder %s74, %s90
      %p92 = scmp.eq.s32.totalorder %s24, 0
      %p93 = por %p91, %p92
      %s94 = ssub.s32 %s25, %s37
      %p95 = scmp.eq.s32.totalorder %s94, 0
      %s97 = sadd.s32 %s96, 1
      %s98 = scalar_select %p95, %s96, %s97
      %p101 = pneg %p95
      %p102 = scmp.eq.s32.totalorder %s18, 1
      %p103 = por %p101, %p102
      %p104 = scmp.ne.s32.totalorder %s96, %s99
      %p105 = scmp.eq.s32.totalorder %s18, 0
      %p106 = por %p104, %p105
      %p107 = scmp.ne.s32.totalorder %s96, %s99
      %p108 = scmp.eq.s32.totalorder %s23, 1
      %p109 = por %p107, %p108
      %p110 = scmp.ne.s32.totalorder %s99, %s100
      %p111 = scmp.eq.s32.totalorder %s23, 0
      %p112 = por %p110, %p111
      %p113 = scmp.ne.s32.totalorder %s99, %s100
      %p114 = scmp.eq.s32.totalorder %s24, 1
      %p115 = por %p113, %p114
      %p117 = scmp.ne.s32.totalorder %s100, %s116
      %p118 = scmp.eq.s32.totalorder %s24, 0
      %p119 = por %p117, %p118
      %s121 = sadd.s32 %s120, 1
      %p124 = scmp.eq.s32.totalorder %s18, 1
      %p125 = scmp.ne.s32.totalorder %s120, %s122
      %p126 = scmp.eq.s32.totalorder %s18, 0
      %p127 = por %p125, %p126
      %p128 = scmp.ne.s32.totalorder %s120, %s122
      %p129 = scmp.eq.s32.totalorder %s23, 1
      %p130 = por %p128, %p129
      %p131 = scmp.ne.s32.totalorder %s122, %s123
      %p132 = scmp.eq.s32.totalorder %s23, 0
      %p133 = por %p131, %p132
      %p134 = scmp.ne.s32.totalorder %s122, %s123
      %p135 = scmp.eq.s32.totalorder %s24, 1
      %p136 = por %p134, %p135
      %p138 = scmp.ne.s32.totalorder %s123, %s137
      %p139 = scmp.eq.s32.totalorder %s24, 0
      %p140 = por %p138, %p139
      %s142 = sadd.s32 %s141, 1
      %p145 = scmp.eq.s32.totalorder %s18, 1
      %p146 = scmp.ne.s32.totalorder %s141, %s143
      %p147 = scmp.eq.s32.totalorder %s18, 0
      %p148 = por %p146, %p147
      %p149 = scmp.ne.s32.totalorder %s141, %s143
      %p150 = scmp.eq.s32.totalorder %s23, 1
      %p151 = por %p149, %p150
      %p152 = scmp.ne.s32.totalorder %s143, %s144
      %p153 = scmp.eq.s32.totalorder %s23, 0
      %p154 = por %p152, %p153
      %p155 = scmp.ne.s32.totalorder %s143, %s144
      %p156 = scmp.eq.s32.totalorder %s24, 1
      %p157 = por %p155, %p156
      %p159 = scmp.ne.s32.totalorder %s144, %s158
      %p160 = scmp.eq.s32.totalorder %s24, 0
      %p161 = por %p159, %p160
      %s163 = sadd.s32 %s162, 1
      %p166 = scmp.eq.s32.totalorder %s18, 1
      %p167 = scmp.ne.s32.totalorder %s162, %s164
      %p168 = scmp.eq.s32.totalorder %s18, 0
      %p169 = por %p167, %p168
      %p170 = scmp.ne.s32.totalorder %s162, %s164
      %p171 = scmp.eq.s32.totalorder %s23, 1
      %p172 = por %p170, %p171
      %p173 = scmp.ne.s32.totalorder %s164, %s165
      %p174 = scmp.eq.s32.totalorder %s23, 0
      %p175 = por %p173, %p174
      %p176 = scmp.ne.s32.totalorder %s164, %s165
      %p177 = scmp.eq.s32.totalorder %s24, 1
      %p178 = por %p176, %p177
      %p180 = scmp.ne.s32.totalorder %s165, %s179
      %p181 = scmp.eq.s32.totalorder %s24, 0
      %p182 = por %p180, %p181
      %s183 = ssub.s32 %s25, %s37
      %s184 = ssub.s32 %s26, %s33
      %s185 = sor.u32 %s183, %s184
      %p186 = scmp.eq.s32.totalorder %s185, 0
      %s188 = sadd.s32 %s187, 1
      %s189 = scalar_select %p186, %s187, %s188
      %p192 = pneg %p186
      %p193 = scmp.eq.s32.totalorder %s18, 1
      %p194 = por %p192, %p193
      %p195 = scmp.ne.s32.totalorder %s187, %s190
      %p196 = scmp.eq.s32.totalorder %s18, 0
      %p197 = por %p195, %p196
      %p198 = scmp.ne.s32.totalorder %s187, %s190
      %p199 = scmp.eq.s32.totalorder %s23, 1
      %p200 = por %p198, %p199
      %p201 = scmp.ne.s32.totalorder %s190, %s191
      %p202 = scmp.eq.s32.totalorder %s23, 0
      %p203 = por %p201, %p202
      %p204 = scmp.ne.s32.totalorder %s190, %s191
      %p205 = scmp.eq.s32.totalorder %s24, 1
      %p206 = por %p204, %p205
      %p208 = scmp.ne.s32.totalorder %s191, %s207
      %p209 = scmp.eq.s32.totalorder %s24, 0
      %p210 = por %p208, %p209
      %p211 = scmp.le.s32.totalorder 1, %s18
      %p212 = scmp.lt.s32.totalorder %s18, 3
      %p213 = pnand %p211, %p212
      %p214 = pneg %p213
      // Predicated region
      $region9: #{tpu_custom_call.1} parent=5 // pred_check
        _
      $region10: #{tpu_custom_call.1} parent=5 // pred_check_branch
        %216 = sbr.rel (%p213) target = $region12
      $region11: #{tpu_custom_call.1} parent=5 // pred_region
        %s217 = ssub.s32 %s18, 1
        // Predicated region
        $region13: #{tpu_custom_call.1} parent=11 // pred_check
          %p218 = pneg %p133
        $region14: #{tpu_custom_call.1} parent=11 // pred_check_branch
          %220 = sbr.rel (%p218) target = $region16
        $region15: #{tpu_custom_call.1} parent=11 // pred_region
          _
        $region16: #{tpu_custom_call.1} parent=11 // pred_fallthru
          _
        // Predicated region
        $region17: #{tpu_custom_call.1} parent=11 // pred_check
          %p221 = pneg %p154
        $region18: #{tpu_custom_call.1} parent=11 // pred_check_branch
          %223 = sbr.rel (%p221) target = $region20
        $region19: #{tpu_custom_call.1} parent=11 // pred_region
          _
        $region20: #{tpu_custom_call.1} parent=11 // pred_fallthru
          _
        // Predicated region
        $region21: #{tpu_custom_call.1} parent=11 // pred_check
          %p224 = pneg %p175
        $region22: #{tpu_custom_call.1} parent=11 // pred_check_branch
          %226 = sbr.rel (%p224) target = $region24
        $region23: #{tpu_custom_call.1} parent=11 // pred_region
          _
        $region24: #{tpu_custom_call.1} parent=11 // pred_fallthru
          _
      $region12: #{tpu_custom_call.1} parent=5 // pred_fallthru
        _
      %p227 = scmp.lt.s32.totalorder %s18, 2
      // Predicated region
      $region25: #{tpu_custom_call.1} parent=5 // pred_check
        %p228 = pneg %p227
      $region26: #{tpu_custom_call.1} parent=5 // pred_check_branch
        %230 = sbr.rel (%p228) target = $region28
      $region27: #{tpu_custom_call.1} parent=5 // pred_region
        // Predicated region
        $region29: #{tpu_custom_call.1} parent=27 // pred_check
          %p231 = pneg %p52
        $region30: #{tpu_custom_call.1} parent=27 // pred_check_branch
          %233 = sbr.rel (%p231) target = $region32
        $region31: #{tpu_custom_call.1} parent=27 // pred_region
          %p234 = scmp.lt.s32.totalorder %s25, 1
          %s235 = scalar_select %p234, %s25, 1
          %p236 = scmp.lt.s32.totalorder %s26, 0
          %s237 = scalar_select %p236, %s26, 0
          %s238 = smul.addr %s235, 8
          %s239 = sadd.s32 %s237, %s238
          %s240 = smul.addr %s239, 8
          %s241 = scalar_lea.vmem %s0, %s240
        $region32: #{tpu_custom_call.1} parent=27 // pred_fallthru
          _
        // Predicated region
        $region33: #{tpu_custom_call.1} parent=27 // pred_check
          %p242 = pneg %p80
        $region34: #{tpu_custom_call.1} parent=27 // pred_check_branch
          %244 = sbr.rel (%p242) target = $region36
        $region35: #{tpu_custom_call.1} parent=27 // pred_region
          %s245 = sand.u32 %s70, 1
          %s246 = scalar_lea.sflag [#allocation3], %s245
          %s247 = sand.u32 %s70, 1
          %s248 = smul.addr %s247, 64
          %s249 = scalar_lea.vmem [#allocation2], %s248
          %s251 = ssub.s32 1024, 1024
          %252 = vsyncadd %s246, %s251
          %s253 = smul.addr %s25, 8
          %s254 = sadd.s32 %s26, %s253
          %s255 = smul.addr %s254, 128
          %s256 = scalar_lea.hbm %s1, %s255
          %s257 = sshll.u32 %s249, 4
          %s258 = int_to_ptr.vmem [resolvable:$true] %s257
          %263 = dma.hbm_to_vmem [thread:$0]  %s256, 1024, %s258, %s246, 128, 128, 8
        $region36: #{tpu_custom_call.1} parent=27 // pred_fallthru
          _
        // Predicated region
        $region37: #{tpu_custom_call.1} parent=27 // pred_check
          %p264 = pneg %p106
        $region38: #{tpu_custom_call.1} parent=27 // pred_check_branch
          %266 = sbr.rel (%p264) target = $region40
        $region39: #{tpu_custom_call.1} parent=27 // pred_region
          %p267 = scmp.lt.s32.totalorder %s25, 1
          %s268 = scalar_select %p267, %s25, 1
          %s269 = smul.addr %s268, 8
          %s270 = smul.addr %s269, 8
          %s271 = scalar_lea.vmem %s2, %s270
        $region40: #{tpu_custom_call.1} parent=27 // pred_fallthru
          _
      $region28: #{tpu_custom_call.1} parent=5 // pred_fallthru
        _
      %p272 = scmp.le.s32.totalorder 1, %s18
      %p273 = scmp.lt.s32.totalorder %s18, 3
      %p274 = pnand %p272, %p273
      %p275 = pneg %p274
      // Predicated region
      $region41: #{tpu_custom_call.1} parent=5 // pred_check
        _
      $region42: #{tpu_custom_call.1} parent=5 // pred_check_branch
        %277 = sbr.rel (%p274) target = $region44
      $region43: #{tpu_custom_call.1} parent=5 // pred_region
        %s278 = ssub.s32 %s18, 1
        %s279 = sand.u32 %s73, 1
        %s280 = scalar_lea.sflag [#allocation3], %s279
        %s281 = sand.u32 %s73, 1
        %s282 = smul.addr %s281, 64
        %s283 = scalar_lea.vmem [#allocation2], %s282
        // Predicated region
        $region45: #{tpu_custom_call.1} parent=43 // pred_check
          %p284 = pneg %p86
        $region46: #{tpu_custom_call.1} parent=43 // pred_check_branch
          %286 = sbr.rel (%p284) target = $region48
        $region47: #{tpu_custom_call.1} parent=43 // pred_region
          %287 = dma.done %s280, 1024
        $region48: #{tpu_custom_call.1} parent=43 // pred_fallthru
          _
        %p288 = scmp.lt.s32.totalorder %s27, 1
        %s289 = scalar_select %p288, %s27, 1
        %p290 = scmp.lt.s32.totalorder %s28, 0
        %s291 = scalar_select %p290, %s28, 0
        %s292 = smul.addr %s289, 8
        %s293 = sadd.s32 %s291, %s292
        %s294 = smul.addr %s293, 8
        %s295 = scalar_lea.vmem %s0, %s294
        %p296 = pneg %p58
        %p297 = pneg %p55
        %s298 = sand.u32 %s73, 1
        %s299 = scalar_lea.sflag [#allocation3], %s298
        %s300 = sand.u32 %s73, 1
        %s301 = smul.addr %s300, 64
        %s302 = scalar_lea.vmem [#allocation2], %s301
        %p303 = pneg %p86
        %p304 = pneg %p83
        %p305 = scmp.lt.s32.totalorder %s27, 1
        %s306 = scalar_select %p305, %s27, 1
        %s307 = smul.addr %s306, 8
        %s308 = smul.addr %s307, 8
        %s309 = scalar_lea.vmem %s2, %s308
        %p310 = pneg %p112
        %p311 = pneg %p109
        %p312 = pneg %p133
        %p313 = pneg %p130
        %p314 = pneg %p154
        %p315 = pneg %p151
        %p316 = pneg %p175
        %p317 = pneg %p172
        %p318 = pneg %p203
        %p319 = pneg %p200
        %s320 = sand.u32 %s190, 1
        %s321 = scalar_lea.sflag [#allocation4], %s320
        %s322 = sand.u32 %s190, 1
        %s323 = smul.addr %s322, 64
        %s324 = scalar_lea.vmem [#allocation5], %s323
        %p325 = scmp.lt.s32.totalorder %s27, 1
        %s326 = scalar_select %p325, %s27, 1
        %p327 = scmp.lt.s32.totalorder %s28, 0
        %s328 = scalar_select %p327, %s28, 0
        %s329 = smul.addr %s326, 8
        %s330 = sadd.s32 %s328, %s329
        %s331 = smul.addr %s330, 8
        %s332 = scalar_lea.vmem %s0, %s331
        %p333 = scmp.lt.s32.totalorder %s27, 1
        %s334 = scalar_select %p333, %s27, 1
        %s335 = smul.addr %s334, 8
        %s336 = smul.addr %s335, 8
        %s337 = scalar_lea.vmem %s2, %s336
        %v338 = vld [vmem:[%s332] sm:$0xff]
        %v339 = vld [vmem:[%s332 + $0x8] sm:$0xff]
        %v340 = vld [vmem:[%s332 + $0x10] sm:$0xff]
        %v341 = vld [vmem:[%s332 + $0x18] sm:$0xff]
        %v342 = vld [vmem:[%s332 + $0x20] sm:$0xff]
        %v343 = vld [vmem:[%s332 + $0x28] sm:$0xff]
        %v344 = vld [vmem:[%s332 + $0x30] sm:$0xff]
        %v345 = vld [vmem:[%s332 + $0x38] sm:$0xff]
        %v346 = vld [vmem:[%s283] sm:$0xff]
        %v347 = vld [vmem:[%s283 + $0x8] sm:$0xff]
        %v348 = vld [vmem:[%s283 + $0x10] sm:$0xff]
        %v349 = vld [vmem:[%s283 + $0x18] sm:$0xff]
        %v350 = vld [vmem:[%s283 + $0x20] sm:$0xff]
        %v351 = vld [vmem:[%s283 + $0x28] sm:$0xff]
        %v352 = vld [vmem:[%s283 + $0x30] sm:$0xff]
        %v353 = vld [vmem:[%s283 + $0x38] sm:$0xff]
        %v354 = vadd.f32 %v338, %v346
        %v355 = vadd.f32 %v339, %v347
        %v356 = vadd.f32 %v340, %v348
        %v357 = vadd.f32 %v341, %v349
        %v358 = vadd.f32 %v342, %v350
        %v359 = vadd.f32 %v343, %v351
        %v360 = vadd.f32 %v344, %v352
        %v361 = vadd.f32 %v345, %v353
        %v362 = vld [vmem:[%s3] sm:$0xff]
        %v363 = vld [vmem:[%s3 + $0x8] sm:$0xff]
        %v364 = vld [vmem:[%s4] sm:$0xff]
        %v365 = vld [vmem:[%s4 + $0x8] sm:$0xff]
        %367 = vset.pattern.permute.xlu0 0
        %368 = vperm.xlu0 %367, %v364
        %v369 = vpop.permute.xlu0 %368
        %372 = vset.pattern.permute.xlu0 0
        %373 = vperm.xlu0 %372, %v365
        %v374 = vpop.permute.xlu0 %373
        %vm376 = vcmask 523264
        %v378 = vsel %vm376, %v362, 0
        %v381 = vsel %vm376, %v363, 0
        %383 = vmatprep.subr.mxu0 0.0
        %384 = vmatpush1.msra.mxu0 %v354
        %385 = vmatprep.subr.mxu0 0.0
        %386 = vmatpush1.msra.mxu0 %v355
        %387 = vmatprep.subr.mxu0 0.0
        %388 = vmatpush1.msra.mxu0 %v356
        %389 = vmatprep.subr.mxu0 0.0
        %390 = vmatpush1.msra.mxu0 %v357
        %391 = vmatprep.subr.mxu0 0.0
        %392 = vmatpush1.msra.mxu0 %v358
        %393 = vmatprep.subr.mxu0 0.0
        %394 = vmatpush1.msra.mxu0 %v359
        %395 = vmatprep.subr.mxu0 0.0
        %396 = vmatpush1.msra.mxu0 %v360
        %397 = vmatprep.subr.mxu0 0.0
        %398 = vmatpush1.msra.mxu0 %v361
        %399 = vmatprep.subr.mxu0 0.0
        %400 = vmatpush1.msra.mxu0 0.0
        %401 = vmatprep.subr.mxu0 0.0
        %402 = vmatpush1.msra.mxu0 0.0
        %403 = vmatprep.subr.mxu0 0.0
        %404 = vmatpush1.msra.mxu0 0.0
        %405 = vmatprep.subr.mxu0 0.0
        %406 = vmatpush1.msra.mxu0 0.0
        %407 = vmatprep.subr.mxu0 0.0
        %408 = vmatpush1.msra.mxu0 0.0
        %409 = vmatprep.subr.mxu0 0.0
        %410 = vmatpush1.msra.mxu0 0.0
        %411 = vmatprep.subr.mxu0 0.0
        %412 = vmatpush1.msra.mxu0 0.0
        %413 = vmatprep.subr.mxu0 0.0
        %414 = vmatpush1.msra.mxu0 0.0
        %415 = vmatprep.subr.mxu0 0.0
        %416 = vmatpush1.msra.mxu0 0.0
        %417 = vmatprep.subr.mxu0 0.0
        %418 = vmatpush1.msra.mxu0 0.0
        %419 = vmatprep.subr.mxu0 0.0
        %420 = vmatpush1.msra.mxu0 0.0
        %421 = vmatprep.subr.mxu0 0.0
        %422 = vmatpush1.msra.mxu0 0.0
        %423 = vmatprep.subr.mxu0 0.0
        %424 = vmatpush1.msra.mxu0 0.0
        %425 = vmatprep.subr.mxu0 0.0
        %426 = vmatpush1.msra.mxu0 0.0
        %427 = vmatprep.subr.mxu0 0.0
        %428 = vmatpush1.msra.mxu0 0.0
        %429 = vmatprep.subr.mxu0 0.0
        %430 = vmatpush1.msra.mxu0 0.0
        %431 = vmatprep.subr.mxu0 0.0
        %432 = vmatpush1.msra.mxu0 0.0
        %433 = vmatprep.subr.mxu0 0.0
        %434 = vmatpush1.msra.mxu0 0.0
        %435 = vmatprep.subr.mxu0 0.0
        %436 = vmatpush1.msra.mxu0 0.0
        %437 = vmatprep.subr.mxu0 0.0
        %438 = vmatpush1.msra.mxu0 0.0
        %439 = vmatprep.subr.mxu0 0.0
        %440 = vmatpush1.msra.mxu0 0.0
        %441 = vmatprep.subr.mxu0 0.0
        %442 = vmatpush1.msra.mxu0 0.0
        %443 = vmatprep.subr.mxu0 0.0
        %444 = vmatpush1.msra.mxu0 0.0
        %445 = vmatprep.subr.mxu0 0.0
        %446 = vmatpush1.msra.mxu0 0.0
        %447 = vmatprep.mubr.f32.mxu0 0.0
        %448 = vmatmul.mubr.f32.gmra.mrb[0].mxu0 %v378
        %v449 = vpop.f32.mrb[0].mxu0
        %v450 = vadd.f32 %v369, %v449
        %v451 = vpop.f32.mrb[0].mxu0
        %452 = vmatprep.mubr.f32.mxu0 0.0
        %453 = vmatmul.mubr.f32.gmra.mrb[0].mxu0 %v381
        %v454 = vpop.f32.mrb[0].mxu0
        %v455 = vadd.f32 %v374, %v454
        %v456 = vpop.f32.mrb[0].mxu0
        %457 = vdwg.mxu0
        %v458 = vmax.f32 %v450, 0.0
        %v459 = vmax.f32 %v455, 0.0
        %v460 = vld [vmem:[%s5] sm:$0xff]
        %v461 = vld [vmem:[%s5 + $0x8] sm:$0xff]
        %v462 = vld [vmem:[%s5 + $0x10] sm:$0xff]
        %v463 = vld [vmem:[%s5 + $0x18] sm:$0xff]
        %v464 = vld [vmem:[%s5 + $0x20] sm:$0xff]
        %v465 = vld [vmem:[%s5 + $0x28] sm:$0xff]
        %v466 = vld [vmem:[%s5 + $0x30] sm:$0xff]
        %v467 = vld [vmem:[%s5 + $0x38] sm:$0xff]
        %v468 = vld [vmem:[%s337] sm:$0xff]
        %v469 = vld [vmem:[%s337 + $0x8] sm:$0xff]
        %v470 = vld [vmem:[%s337 + $0x10] sm:$0xff]
        %v471 = vld [vmem:[%s337 + $0x18] sm:$0xff]
        %v472 = vld [vmem:[%s337 + $0x20] sm:$0xff]
        %v473 = vld [vmem:[%s337 + $0x28] sm:$0xff]
        %v474 = vld [vmem:[%s337 + $0x30] sm:$0xff]
        %v475 = vld [vmem:[%s337 + $0x38] sm:$0xff]
        %477 = vset.pattern.permute.xlu0 0
        %478 = vperm.xlu0 %477, %v468
        %v479 = vpop.permute.xlu0 %478
        %482 = vset.pattern.permute.xlu0 0
        %483 = vperm.xlu0 %482, %v469
        %v484 = vpop.permute.xlu0 %483
        %487 = vset.pattern.permute.xlu0 0
        %488 = vperm.xlu0 %487, %v470
        %v489 = vpop.permute.xlu0 %488
        %492 = vset.pattern.permute.xlu0 0
        %493 = vperm.xlu0 %492, %v471
        %v494 = vpop.permute.xlu0 %493
        %497 = vset.pattern.permute.xlu0 0
        %498 = vperm.xlu0 %497, %v472
        %v499 = vpop.permute.xlu0 %498
        %502 = vset.pattern.permute.xlu0 0
        %503 = vperm.xlu0 %502, %v473
        %v504 = vpop.permute.xlu0 %503
        %507 = vset.pattern.permute.xlu0 0
        %508 = vperm.xlu0 %507, %v474
        %v509 = vpop.permute.xlu0 %508
        %512 = vset.pattern.permute.xlu0 0
        %513 = vperm.xlu0 %512, %v475
        %v514 = vpop.permute.xlu0 %513
        %vm516 = vcmask 130048
        %v518 = vsel %vm516, %v460, 0
        %v521 = vsel %vm516, %v461, 0
        %v524 = vsel %vm516, %v462, 0
        %v527 = vsel %vm516, %v463, 0
        %v530 = vsel %vm516, %v464, 0
        %v533 = vsel %vm516, %v465, 0
        %v536 = vsel %vm516, %v466, 0
        %v539 = vsel %vm516, %v467, 0
        %541 = vmatprep.subr.mxu0 0.0
        %542 = vmatpush1.msra.mxu0 %v458
        %543 = vmatprep.subr.mxu0 0.0
        %544 = vmatpush1.msra.mxu0 %v459
        %545 = vmatprep.subr.mxu0 0.0
        %546 = vmatpush1.msra.mxu0 0.0
        %547 = vmatprep.subr.mxu0 0.0
        %548 = vmatpush1.msra.mxu0 0.0
        %549 = vmatprep.subr.mxu0 0.0
        %550 = vmatpush1.msra.mxu0 0.0
        %551 = vmatprep.subr.mxu0 0.0
        %552 = vmatpush1.msra.mxu0 0.0
        %553 = vmatprep.subr.mxu0 0.0
        %554 = vmatpush1.msra.mxu0 0.0
        %555 = vmatprep.subr.mxu0 0.0
        %556 = vmatpush1.msra.mxu0 0.0
        %557 = vmatprep.subr.mxu0 0.0
        %558 = vmatpush1.msra.mxu0 0.0
        %559 = vmatprep.subr.mxu0 0.0
        %560 = vmatpush1.msra.mxu0 0.0
        %561 = vmatprep.subr.mxu0 0.0
        %562 = vmatpush1.msra.mxu0 0.0
        %563 = vmatprep.subr.mxu0 0.0
        %564 = vmatpush1.msra.mxu0 0.0
        %565 = vmatprep.subr.mxu0 0.0
        %566 = vmatpush1.msra.mxu0 0.0
        %567 = vmatprep.subr.mxu0 0.0
        %568 = vmatpush1.msra.mxu0 0.0
        %569 = vmatprep.subr.mxu0 0.0
        %570 = vmatpush1.msra.mxu0 0.0
        %571 = vmatprep.subr.mxu0 0.0
        %572 = vmatpush1.msra.mxu0 0.0
        %573 = vmatprep.subr.mxu0 0.0
        %574 = vmatpush1.msra.mxu0 0.0
        %575 = vmatprep.subr.mxu0 0.0
        %576 = vmatpush1.msra.mxu0 0.0
        %577 = vmatprep.subr.mxu0 0.0
        %578 = vmatpush1.msra.mxu0 0.0
        %579 = vmatprep.subr.mxu0 0.0
        %580 = vmatpush1.msra.mxu0 0.0
        %581 = vmatprep.subr.mxu0 0.0
        %582 = vmatpush1.msra.mxu0 0.0
        %583 = vmatprep.subr.mxu0 0.0
        %584 = vmatpush1.msra.mxu0 0.0
        %585 = vmatprep.subr.mxu0 0.0
        %586 = vmatpush1.msra.mxu0 0.0
        %587 = vmatprep.subr.mxu0 0.0
        %588 = vmatpush1.msra.mxu0 0.0
        %589 = vmatprep.subr.mxu0 0.0
        %590 = vmatpush1.msra.mxu0 0.0
        %591 = vmatprep.subr.mxu0 0.0
        %592 = vmatpush1.msra.mxu0 0.0
        %593 = vmatprep.subr.mxu0 0.0
        %594 = vmatpush1.msra.mxu0 0.0
        %595 = vmatprep.subr.mxu0 0.0
        %596 = vmatpush1.msra.mxu0 0.0
        %597 = vmatprep.subr.mxu0 0.0
        %598 = vmatpush1.msra.mxu0 0.0
        %599 = vmatprep.subr.mxu0 0.0
        %600 = vmatpush1.msra.mxu0 0.0
        %601 = vmatprep.subr.mxu0 0.0
        %602 = vmatpush1.msra.mxu0 0.0
        %603 = vmatprep.subr.mxu0 0.0
        %604 = vmatpush1.msra.mxu0 0.0
        %605 = vmatprep.mubr.f32.mxu0 0.0
        %606 = vmatmul.mubr.f32.gmra.mrb[0].mxu0 %v518
        %v607 = vpop.f32.mrb[0].mxu0
        %v608 = vadd.f32 %v479, %v607
        %v609 = vpop.f32.mrb[0].mxu0
        %610 = vmatprep.mubr.f32.mxu0 0.0
        %611 = vmatmul.mubr.f32.gmra.mrb[0].mxu0 %v521
        %v612 = vpop.f32.mrb[0].mxu0
        %v613 = vadd.f32 %v484, %v612
        %v614 = vpop.f32.mrb[0].mxu0
        %615 = vmatprep.mubr.f32.mxu0 0.0
        %616 = vmatmul.mubr.f32.gmra.mrb[0].mxu0 %v524
        %v617 = vpop.f32.mrb[0].mxu0
        %v618 = vadd.f32 %v489, %v617
        %v619 = vpop.f32.mrb[0].mxu0
        %620 = vmatprep.mubr.f32.mxu0 0.0
        %621 = vmatmul.mubr.f32.gmra.mrb[0].mxu0 %v527
        %v622 = vpop.f32.mrb[0].mxu0
        %v623 = vadd.f32 %v494, %v622
        %v624 = vpop.f32.mrb[0].mxu0
        %625 = vmatprep.mubr.f32.mxu0 0.0
        %626 = vmatmul.mubr.f32.gmra.mrb[0].mxu0 %v530
        %v627 = vpop.f32.mrb[0].mxu0
        %v628 = vadd.f32 %v499, %v627
        %v629 = vpop.f32.mrb[0].mxu0
        %630 = vmatprep.mubr.f32.mxu0 0.0
        %631 = vmatmul.mubr.f32.gmra.mrb[0].mxu0 %v533
        %v632 = vpop.f32.mrb[0].mxu0
        %v633 = vadd.f32 %v504, %v632
        %v634 = vpop.f32.mrb[0].mxu0
        %635 = vmatprep.mubr.f32.mxu0 0.0
        %636 = vmatmul.mubr.f32.gmra.mrb[0].mxu0 %v536
        %v637 = vpop.f32.mrb[0].mxu0
        %v638 = vadd.f32 %v509, %v637
        %v639 = vpop.f32.mrb[0].mxu0
        %640 = vmatprep.mubr.f32.mxu0 0.0
        %641 = vmatmul.mubr.f32.gmra.mrb[0].mxu0 %v539
        %v642 = vpop.f32.mrb[0].mxu0
        %v643 = vadd.f32 %v514, %v642
        %v644 = vpop.f32.mrb[0].mxu0
        %645 = vdwg.mxu0
        %v646 = vxor.u32 %v608, 2147483648
        %v647 = vxor.u32 %v613, 2147483648
        %v648 = vxor.u32 %v618, 2147483648
        %v649 = vxor.u32 %v623, 2147483648
        %v650 = vxor.u32 %v628, 2147483648
        %v651 = vxor.u32 %v633, 2147483648
        %v652 = vxor.u32 %v638, 2147483648
        %v653 = vxor.u32 %v643, 2147483648
        %v654 = vmul.f32 %v646, 1.442695
        %v655 = vpow.pop %v654
        %v656 = vmul.f32 %v647, 1.442695
        %v657 = vpow.pop %v656
        %v658 = vmul.f32 %v648, 1.442695
        %v659 = vpow.pop %v658
        %v660 = vmul.f32 %v649, 1.442695
        %v661 = vpow.pop %v660
        %v662 = vmul.f32 %v650, 1.442695
        %v663 = vpow.pop %v662
        %v664 = vmul.f32 %v651, 1.442695
        %v665 = vpow.pop %v664
        %v666 = vmul.f32 %v652, 1.442695
        %v667 = vpow.pop %v666
        %v668 = vmul.f32 %v653, 1.442695
        %v669 = vpow.pop %v668
        %v670 = vadd.f32 %v655, 1.0
        %v671 = vadd.f32 %v657, 1.0
        %v672 = vadd.f32 %v659, 1.0
        %v673 = vadd.f32 %v661, 1.0
        %v674 = vadd.f32 %v663, 1.0
        %v675 = vadd.f32 %v665, 1.0
        %v676 = vadd.f32 %v667, 1.0
        %v677 = vadd.f32 %v669, 1.0
        %v678 = vrcp.pop %v670
        %v679 = vmul.f32 1.0, %v678
        %v680 = vrcp.pop %v671
        %v681 = vmul.f32 1.0, %v680
        %v682 = vrcp.pop %v672
        %v683 = vmul.f32 1.0, %v682
        %v684 = vrcp.pop %v673
        %v685 = vmul.f32 1.0, %v684
        %v686 = vrcp.pop %v674
        %v687 = vmul.f32 1.0, %v686
        %v688 = vrcp.pop %v675
        %v689 = vmul.f32 1.0, %v688
        %v690 = vrcp.pop %v676
        %v691 = vmul.f32 1.0, %v690
        %v692 = vrcp.pop %v677
        %v693 = vmul.f32 1.0, %v692
        %v694 = vsub.f32 %v338, %v346
        %v695 = vsub.f32 %v339, %v347
        %v696 = vsub.f32 %v340, %v348
        %v697 = vsub.f32 %v341, %v349
        %v698 = vsub.f32 %v342, %v350
        %v699 = vsub.f32 %v343, %v351
        %v700 = vsub.f32 %v344, %v352
        %v701 = vsub.f32 %v345, %v353
        %v702 = vmul.f32 %v679, %v694
        %v703 = vmul.f32 %v681, %v695
        %v704 = vmul.f32 %v683, %v696
        %v705 = vmul.f32 %v685, %v697
        %v706 = vmul.f32 %v687, %v698
        %v707 = vmul.f32 %v689, %v699
        %v708 = vmul.f32 %v691, %v700
        %v709 = vmul.f32 %v693, %v701
        %v710 = vadd.f32 %v346, %v702
        %v711 = vadd.f32 %v347, %v703
        %v712 = vadd.f32 %v348, %v704
        %v713 = vadd.f32 %v349, %v705
        %v714 = vadd.f32 %v350, %v706
        %v715 = vadd.f32 %v351, %v707
        %v716 = vadd.f32 %v352, %v708
        %v717 = vadd.f32 %v353, %v709
        %v718 = vmul.f32 %v710, 2.0
        %v719 = vmul.f32 %v711, 2.0
        %v720 = vmul.f32 %v712, 2.0
        %v721 = vmul.f32 %v713, 2.0
        %v722 = vmul.f32 %v714, 2.0
        %v723 = vmul.f32 %v715, 2.0
        %v724 = vmul.f32 %v716, 2.0
        %v725 = vmul.f32 %v717, 2.0
        %726 = vst.msk [vmem:[%s324] sm:$0xff] %vm376, %v718
        %727 = vst.msk [vmem:[%s324 + $0x8] sm:$0xff] %vm376, %v719
        %728 = vst.msk [vmem:[%s324 + $0x10] sm:$0xff] %vm376, %v720
        %729 = vst.msk [vmem:[%s324 + $0x18] sm:$0xff] %vm376, %v721
        %730 = vst.msk [vmem:[%s324 + $0x20] sm:$0xff] %vm376, %v722
        %731 = vst.msk [vmem:[%s324 + $0x28] sm:$0xff] %vm376, %v723
        %732 = vst.msk [vmem:[%s324 + $0x30] sm:$0xff] %vm376, %v724
        %733 = vst.msk [vmem:[%s324 + $0x38] sm:$0xff] %vm376, %v725
        %s734 = sand.u32 %s190, 1
        %s735 = scalar_lea.sflag [#allocation4], %s734
        %s736 = sand.u32 %s190, 1
        %s737 = smul.addr %s736, 64
        %s738 = scalar_lea.vmem [#allocation5], %s737
        // Predicated region
        $region49: #{tpu_custom_call.1} parent=43 // pred_check
          %p739 = pneg %p200
        $region50: #{tpu_custom_call.1} parent=43 // pred_check_branch
          %741 = sbr.rel (%p739) target = $region52
        $region51: #{tpu_custom_call.1} parent=43 // pred_region
          %s743 = ssub.s32 1024, 1024
          %744 = vsyncadd %s735, %s743
          %s745 = smul.addr %s27, 8
          %s746 = sadd.s32 %s28, %s745
          %s747 = smul.addr %s746, 128
          %s748 = scalar_lea.hbm %s6, %s747
          %s749 = sshll.u32 %s738, 4
          %s750 = int_to_ptr.vmem [resolvable:$true] %s749
          %755 = dma.vmem_to_hbm [thread:$0]  %s750, 1024, %s748, %s735, 128, 128, 8
        $region52: #{tpu_custom_call.1} parent=43 // pred_fallthru
          _
      $region44: #{tpu_custom_call.1} parent=5 // pred_fallthru
        _
      %p756 = scmp.le.s32.totalorder 2, %s18
      // Predicated region
      $region53: #{tpu_custom_call.1} parent=5 // pred_check
        %p757 = pneg %p756
      $region54: #{tpu_custom_call.1} parent=5 // pred_check_branch
        %759 = sbr.rel (%p757) target = $region56
      $region55: #{tpu_custom_call.1} parent=5 // pred_region
        %s760 = ssub.s32 %s18, 2
        // Predicated region
        $region57: #{tpu_custom_call.1} parent=55 // pred_check
          %p761 = pneg %p206
        $region58: #{tpu_custom_call.1} parent=55 // pred_check_branch
          %763 = sbr.rel (%p761) target = $region60
        $region59: #{tpu_custom_call.1} parent=55 // pred_region
          %s764 = sand.u32 %s191, 1
          %s765 = scalar_lea.sflag [#allocation4], %s764
          %s766 = sand.u32 %s191, 1
          %s767 = smul.addr %s766, 64
          %s768 = scalar_lea.vmem [#allocation5], %s767
          %769 = dma.done %s765, 1024
        $region60: #{tpu_custom_call.1} parent=55 // pred_fallthru
          _
      $region56: #{tpu_custom_call.1} parent=5 // pred_fallthru
        _
    $region6: #{tpu_custom_call.1} parent=1 // loop_footer
      %s22 = sadd.s32 1, %s18
    $region7: #{tpu_custom_call.1} parent=1 // loop_footer_branch
      %17 = sbr.rel target = $region3
    $region8: #{tpu_custom_call.1} parent=1 // loop_exit
      _
    %770 = vsyncpa [#allocation3], 1
    %s771 = scalar_lea.sflag [#allocation3], 1
    %772 = vsyncpa %s771, 1
    %773 = vsyncpa [#allocation4], 1
    %s774 = scalar_lea.sflag [#allocation4], 1
    %775 = vsyncpa %s774, 1

</llo_original>
